<compile_context>
chip_gen: v7x
topology: tpu7x:2x2x1
jax: 0.10.0
libtpu: 0.0.40
codegen_flags: <defaults>
</compile_context>

<pallas_src>
import numpy as np
import jax
import jax.numpy as jnp
from jax.experimental import pallas as pl
from jax.experimental.pallas import tpu as pltpu

MED_FRQ = [0.3829, 0.452448, 0.637584, 0.377464, 0.585595, 0.479574, 0.781544,
           0.982534, 1.017466, 0.624581, 2.589096, 0.980794, 0.92034, 0.667984,
           1.172291, 0.86224, 0.921714, 2.154782, 1.187832, 1.178115, 1.848545,
           1.428922, 2.849658, 0.771605, 1.656668, 4.483506, 2.209922, 1.12028,
           2.790182, 0.706519, 3.994768, 2.220004, 0.972934, 1.481525, 5.342475,
           0.750738, 4.040773]
NUM_CLASSES = len(MED_FRQ)  # 37

_VMEM_BUDGET = 28 << 20  # conservative: fits v7x (64 MiB physical / 32 MiB scoped default)


def _round_up(x, m):
    return -(-x // m) * m


def _select_tile(hw, n, c, logit_itemsize, tile_hw):
    """Pick a lane tile under a VMEM budget; return (tile, vmem_limit_bytes)."""
    # Per-lane VMEM footprint: double-buffered logits/targets/output blocks plus a
    # conservative allowance for the in-kernel f32 temporaries (x, e, selects, ...).
    per_lane = (2 * c * logit_itemsize   # logits block, double buffered
                + 2 * 4                  # int32 targets, double buffered
                + 2 * 4                  # f32 output, double buffered
                + 6 * c * 4)             # f32 kernel temporaries (~4-5x logits block)
    budget_tile = max(128, (_VMEM_BUDGET // per_lane) // 128 * 128)
    tile = max(128, min(int(tile_hw), budget_tile) // 128 * 128)
    # never bigger than the (lane-padded) pixel extent
    tile = min(tile, _round_up(hw, 128))
    # keep >= ~8 total grid steps when the image allows it (v7x shards the
    # parallel grid over 2 TensorCores; also keeps the pipeline overlapped)
    steps_per_image = max(1, -(-8 // max(n, 1)))
    tile = min(tile, max(128, _round_up(-(-hw // steps_per_image), 128)))
    # explicit scoped-VMEM request sized for this tile (+ resident weights + slack)
    est = tile * per_lane + 2 * c * 128 * 4
    vmem_limit = min(max(int(est * 1.3) + (1 << 20), 16 << 20), 60 << 20)
    return tile, vmem_limit


def _focal_kernel(logits_ref, tgt_ref, w_ref, out_ref):
    # logits_ref: (1, C, T) native dtype   (classes on sublanes, pixels on lanes)
    # tgt_ref:    (1, 1, T) int32
    # w_ref:      (C, 128)  float32        (constant index_map -> VMEM-resident)
    # out_ref:    (1, 1, T) float32        (lane-dense output store)
    x = logits_ref[0].astype(jnp.float32)          # (C, T) compute in f32
    t = tgt_ref[0]                                 # (1, T) class indices
    c, tp = x.shape

    # log-softmax pieces over the class (sublane) axis
    m = jnp.max(x, axis=0, keepdims=True)          # (1, T)
    e = jnp.exp(x - m)                             # (C, T)  EUP
    s = jnp.sum(e, axis=0, keepdims=True)          # (1, T)
    lse = m + jnp.log(s)                           # (1, T)

    # target gathers via boolean mask: no float one-hot, no (C, T) multiplies
    mask = jax.lax.broadcasted_iota(jnp.int32, (c, tp), 0) == t       # (C, T) bool
    x_t = jnp.sum(jnp.where(mask, x, 0.0), axis=0, keepdims=True)     # x[target]
    e_t = jnp.sum(jnp.where(mask, e, 0.0), axis=0, keepdims=True)     # exp(x[t]-m)

    # class weights: resident (C, 128) tile replicated across lane groups
    # (plain vreg copies; avoids a repeated single-lane broadcast every step)
    reps = tp // 128
    w128 = w_ref[...]
    w_b = w128 if reps == 1 else jnp.concatenate([w128] * reps, axis=1)
    w_t = jnp.sum(jnp.where(mask, w_b, 0.0), axis=0, keepdims=True)   # weight[target]

    logp_t = x_t - lse                             # log_softmax(x)[target]
    omp = (s - e_t) / s                            # 1 - softmax(x)[target], reuses e
    out_ref[0] = (-w_t * omp * omp * logp_t).astype(out_ref.dtype)    # (1, T)


def focal_loss(inputs, targets, weight, gamma=0, size_average=True, tile_hw=16384):
    """Per-pixel focal loss matching FocalLoss.forward (NLLLoss reduce=False).

    inputs:  (N, C, H, W) logits (any float dtype; kept native until the kernel)
    targets: (N, H, W)    int class indices in [0, C-1]
    returns: (N, H, W)    float32 per-pixel losses
    gamma / size_average accepted for signature parity; the reference forward
    hard-codes the exponent 2 and produces unreduced per-element losses.
    """
    n, c, h, w_sp = inputs.shape
    hw = h * w_sp

    logits = inputs.reshape(n, c, hw)                     # layout-preserving
    tgt = targets.reshape(n, 1, hw).astype(jnp.int32)
    wgt = jnp.tile(jnp.asarray(weight, dtype=jnp.float32).reshape(c, 1), (1, 128))

    itemsize = jnp.dtype(inputs.dtype).itemsize
    tile, vmem_limit = _select_tile(hw, n, c, itemsize, tile_hw)
    grid = (n, pl.cdiv(hw, tile))                         # partial last block OK

    out = pl.pallas_call(
        _focal_kernel,
        out_shape=jax.ShapeDtypeStruct((n, 1, hw), jnp.float32),
        grid_spec=pltpu.PrefetchScalarGridSpec(
            num_scalar_prefetch=0,
            grid=grid,
            in_specs=[
                pl.BlockSpec((1, c, tile), lambda i, j: (i, 0, j)),   # logits tile
                pl.BlockSpec((1, 1, tile), lambda i, j: (i, 0, j)),   # target tile
                pl.BlockSpec((c, 128), lambda i, j: (0, 0)),          # weights (resident)
            ],
            out_specs=pl.BlockSpec((1, 1, tile), lambda i, j: (i, 0, j)),
        ),
        compiler_params=pltpu.CompilerParams(
            dimension_semantics=("parallel", "parallel"),   # no cross-step state
            vmem_limit_bytes=vmem_limit,
        ),
    )(logits, tgt, wgt)

    return out[:, 0, :].reshape(n, h, w_sp)


def _reference(inputs, targets, weight):
    """Pure-JAX reference mirroring the PyTorch forward."""
    x = inputs.astype(jnp.float32)
    p = jax.nn.softmax(x, axis=1)
    logp = jax.nn.log_softmax(x, axis=1)
    focal = (1.0 - p) ** 2 * logp                                     # (N, C, H, W)
    t = targets.astype(jnp.int32)
    wgt = jnp.asarray(weight, dtype=jnp.float32)
    picked = jnp.take_along_axis(focal, t[:, None, :, :], axis=1)[:, 0]   # (N, H, W)
    return -wgt[t] * picked


if __name__ == "__main__":
    key = jax.random.PRNGKey(0)
    k_logits, k_tgt = jax.random.split(key)

    N, C, H, W = 2, NUM_CLASSES, 16, 16
    inputs = jax.random.normal(k_logits, (N, C, H, W), dtype=jnp.float32)
    targets = jax.random.randint(k_tgt, (N, H, W), minval=0, maxval=C, dtype=jnp.int32)

    loss = jax.block_until_ready(focal_loss(inputs, targets, MED_FRQ))
    ref = jax.block_until_ready(_reference(inputs, targets, MED_FRQ))
    np.testing.assert_allclose(np.asarray(loss), np.asarray(ref), rtol=1e-5, atol=1e-5)

    print("KERNEL_OK")
</pallas_src>

<mosaic_0001>
module attributes {stable_mosaic.version = 11 : i64} {
  func.func @_focal_kernel(%arg0: i32, %arg1: i32, %arg2: memref<1x37x128xf32, #tpu.memory_space<vmem>>, %arg3: memref<1x1x128xi32, #tpu.memory_space<vmem>>, %arg4: memref<37x128xf32, #tpu.memory_space<vmem>>, %arg5: memref<1x1x128xf32, #tpu.memory_space<vmem>>) attributes {dimension_semantics = [#tpu.dimension_semantics<parallel>, #tpu.dimension_semantics<parallel>], iteration_bounds = array<i64: 2, 2>, scalar_prefetch = 0 : i64, scratch_operands = 0 : i64, tpu.core_type = #tpu.core_type<tc>, window_params = [{transform_indices = @transform_0, window_bounds = array<i64: 1, 37, 128>}, {transform_indices = @transform_1, window_bounds = array<i64: 1, 1, 128>}, {pipeline_mode = #tpu.pipeline_mode<synchronous>, transform_indices = @transform_2, window_bounds = array<i64: 37, 128>}, {transform_indices = @transform_3, window_bounds = array<i64: 1, 1, 128>}]} {
    %c0 = arith.constant 0 : index
    %c0_0 = arith.constant 0 : index
    %c0_1 = arith.constant 0 : index
    %0 = vector.load %arg2[%c0, %c0_0, %c0_1] : memref<1x37x128xf32, #tpu.memory_space<vmem>>, vector<1x37x128xf32>
    %1 = vector.shape_cast %0 : vector<1x37x128xf32> to vector<37x128xf32>
    %c0_2 = arith.constant 0 : index
    %c0_3 = arith.constant 0 : index
    %c0_4 = arith.constant 0 : index
    %2 = vector.load %arg3[%c0_2, %c0_3, %c0_4] : memref<1x1x128xi32, #tpu.memory_space<vmem>>, vector<1x1x128xi32>
    %3 = vector.shape_cast %2 : vector<1x1x128xi32> to vector<1x128xi32>
    %cst = arith.constant dense<0xFF800000> : vector<128xf32>
    %4 = vector.multi_reduction <maximumf>, %1, %cst [0] : vector<37x128xf32> to vector<128xf32>
    %5 = vector.shape_cast %4 : vector<128xf32> to vector<1x128xf32>
    %6 = vector.broadcast %5 : vector<1x128xf32> to vector<37x128xf32>
    %7 = arith.subf %1, %6 : vector<37x128xf32>
    %8 = math.exp %7 : vector<37x128xf32>
    %cst_5 = arith.constant dense<0.000000e+00> : vector<128xf32>
    %9 = vector.multi_reduction <add>, %8, %cst_5 [0] : vector<37x128xf32> to vector<128xf32>
    %10 = vector.shape_cast %9 : vector<128xf32> to vector<1x128xf32>
    %11 = math.log %10 : vector<1x128xf32>
    %12 = arith.addf %5, %11 : vector<1x128xf32>
    %13 = tpu.iota {dimensions = array<i32: 0>} : vector<37x128xi32>
    %14 = vector.broadcast %3 : vector<1x128xi32> to vector<37x128xi32>
    %15 = arith.cmpi eq, %13, %14 : vector<37x128xi32>
    %cst_6 = arith.constant 0.000000e+00 : f32
    %16 = vector.broadcast %cst_6 : f32 to vector<37x128xf32>
    %17 = arith.select %15, %1, %16 : vector<37x128xi1>, vector<37x128xf32>
    %cst_7 = arith.constant dense<0.000000e+00> : vector<128xf32>
    %18 = vector.multi_reduction <add>, %17, %cst_7 [0] : vector<37x128xf32> to vector<128xf32>
    %19 = vector.shape_cast %18 : vector<128xf32> to vector<1x128xf32>
    %cst_8 = arith.constant 0.000000e+00 : f32
    %20 = vector.broadcast %cst_8 : f32 to vector<37x128xf32>
    %21 = arith.select %15, %8, %20 : vector<37x128xi1>, vector<37x128xf32>
    %cst_9 = arith.constant dense<0.000000e+00> : vector<128xf32>
    %22 = vector.multi_reduction <add>, %21, %cst_9 [0] : vector<37x128xf32> to vector<128xf32>
    %23 = vector.shape_cast %22 : vector<128xf32> to vector<1x128xf32>
    %c0_10 = arith.constant 0 : index
    %c0_11 = arith.constant 0 : index
    %24 = vector.load %arg4[%c0_10, %c0_11] : memref<37x128xf32, #tpu.memory_space<vmem>>, vector<37x128xf32>
    %cst_12 = arith.constant 0.000000e+00 : f32
    %25 = vector.broadcast %cst_12 : f32 to vector<37x128xf32>
    %26 = arith.select %15, %24, %25 : vector<37x128xi1>, vector<37x128xf32>
    %cst_13 = arith.constant dense<0.000000e+00> : vector<128xf32>
    %27 = vector.multi_reduction <add>, %26, %cst_13 [0] : vector<37x128xf32> to vector<128xf32>
    %28 = vector.shape_cast %27 : vector<128xf32> to vector<1x128xf32>
    %29 = arith.subf %19, %12 : vector<1x128xf32>
    %30 = arith.subf %10, %23 : vector<1x128xf32>
    %31 = arith.divf %30, %10 : vector<1x128xf32>
    %cst_14 = arith.constant 0.000000e+00 : f32
    %32 = vector.broadcast %cst_14 : f32 to vector<1x128xf32>
    %33 = arith.subf %32, %28 : vector<1x128xf32>
    %34 = arith.mulf %33, %31 : vector<1x128xf32>
    %35 = arith.mulf %34, %31 : vector<1x128xf32>
    %36 = arith.mulf %35, %29 : vector<1x128xf32>
    %c0_15 = arith.constant 0 : index
    %c0_16 = arith.constant 0 : index
    %c0_17 = arith.constant 0 : index
    %37 = vector.load %arg5[%c0_15, %c0_16, %c0_17] : memref<1x1x128xf32, #tpu.memory_space<vmem>>, vector<1x1x128xf32>
    %38 = vector.shape_cast %37 : vector<1x1x128xf32> to vector<1x128xf32>
    %39 = vector.shape_cast %36 : vector<1x128xf32> to vector<1x1x128xf32>
    tpu.vector_store %arg5[%c0_15, %c0_16, %c0_17], %39 {strides = array<i32>} : memref<1x1x128xf32, #tpu.memory_space<vmem>>, vector<1x1x128xf32>,
    return
  }
  func.func @transform_0(%arg0: i32, %arg1: i32) -> (i32, i32, i32) {
    %c0_i32 = arith.constant 0 : i32
    %c0_i32_0 = arith.constant 0 : i32
    return %arg0, %c0_i32, %arg1 : i32, i32, i32
  }
  func.func @transform_1(%arg0: i32, %arg1: i32) -> (i32, i32, i32) {
    %c0_i32 = arith.constant 0 : i32
    %c0_i32_0 = arith.constant 0 : i32
    return %arg0, %c0_i32, %arg1 : i32, i32, i32
  }
  func.func @transform_2(%arg0: i32, %arg1: i32) -> (i32, i32) {
    %c0_i32 = arith.constant 0 : i32
    %c0_i32_0 = arith.constant 0 : i32
    %c0_i32_1 = arith.constant 0 : i32
    return %c0_i32, %c0_i32_0 : i32, i32
  }
  func.func @transform_3(%arg0: i32, %arg1: i32) -> (i32, i32, i32) {
    %c0_i32 = arith.constant 0 : i32
    %c0_i32_0 = arith.constant 0 : i32
    return %arg0, %c0_i32, %arg1 : i32, i32, i32
  }
}

</mosaic_0001>

<llo_original>
// kernel: tpu_custom_call.1
$region0: #{tpu_custom_call.1}
  #allocation0 [shape = 'u32[]', space=smem, size = 0x4, offset = 0x4, fixed_abs, tag = 'smem constant byte address 0x4 - core index']
  #allocation1 [shape = 'u32[144,128]{1,0:T(1,128)}', space=vmem, size = 0x12000, scoped, tag = 'internal scratch']
  %s0 = inlined_call_operand.vmem [shape: f32[2,37,256], index: 0, kind: input, shape index: {}]
  %s1 = inlined_call_operand.vmem [shape: s32[2,1,256], index: 1, kind: input, shape index: {}]
  %s2 = inlined_call_operand.vmem [shape: f32[37,128], index: 2, kind: input, shape index: {}]
  %s3 = inlined_call_operand.hbm [shape: f32[2,1,256], index: 3, kind: output, shape index: {}]
  %s4 = sld [smem:[#allocation0]]
  $region83: #{tpu_custom_call.1} parent=0
    _
  %s6 = ssub.s32 1, %s4
  %s7 = scalar_select 0, %s6, %s4
  $region1: #{tpu_custom_call.1} parent=0
    #allocation2 [shape = 'u8[40960]{0}', space=vmem, size = 0xa000, scoped, tag = 'input window, operand 0']
    #allocation3 [shape = 'u8[1024]{0}', space=vmem, size = 0x400, scoped, tag = 'output window, operand 0']
    #allocation4 [shape = 's32[2]{0}', space=sflag, size = 0x8, scoped, tag = 'scoped memory for tpu_custom_call.1']
    %8 = vsyncpa [#allocation4], 0
    %s9 = scalar_lea.sflag [#allocation4], 1
    %10 = vsyncpa %s9, 0
    loop: start=0, step=1, limit=6
    $region2: #{tpu_custom_call.1} parent=1 // loop_pre_header
      _
    $region3: #{tpu_custom_call.1} parent=1 // loop_header
      %s12 = sphi 0, %s16
      %p13 = scmp.ge.s32.totalorder %s12, 6
      %s19 = sphi 0, %s31
      %s20 = sphi 0, %s27
      %s21 = sphi 0, %s19
      %s22 = sphi 0, %s20
      %s23 = sphi 0, %s21
      %s24 = sphi 0, %s22
      %s36 = sphi 0, %s38
      %s39 = sphi 0, %s36
      %s40 = sphi 0, %s39
      %s56 = sphi 0, %s40
      %s64 = sphi 0, %s66
      %s67 = sphi 0, %s64
      %s68 = sphi 0, %s67
      %s84 = sphi 0, %s68
      %s88 = sphi 0, %s88
      %s90 = sphi 0, %s88
      %s91 = sphi 0, %s90
      %s105 = sphi 0, %s91
      %s113 = sphi 0, %s115
      %s116 = sphi 0, %s113
      %s117 = sphi 0, %s116
      %s133 = sphi 0, %s117
    $region4: #{tpu_custom_call.1} parent=1 // loop_header_branch
      %15 = sbr.rel (%p13) target = $region8
    $region5: #{tpu_custom_call.1} parent=1 // loop_body
      %s17 = ssub.s32 %s12, 1
      %s18 = ssub.s32 %s12, 2
      %s25 = sadd.s32 1, %s20
      %p26 = scmp.ge.s32.totalorder %s25, 2
      %s27 = scalar_select %p26, 0, %s25
      %s28 = sadd.s32 1, %s19
      %s29 = scalar_select %p26, %s28, %s19
      %p30 = scmp.ge.s32.totalorder %s29, 2
      %s31 = scalar_select %p30, 0, %s29
      %s32 = ssub.s32 %s19, %s31
      %s33 = ssub.s32 %s20, %s27
      %s34 = sor.u32 %s32, %s33
      %p35 = scmp.eq.s32.totalorder %s34, 0
      %s37 = sadd.s32 %s36, 1
      %s38 = scalar_select %p35, %s36, %s37
      %p41 = pneg %p35
      %p42 = scmp.eq.s32.totalorder %s12, 3
      %p43 = por %p41, %p42
      %p44 = scmp.ne.s32.totalorder %s36, %s39
      %p45 = scmp.eq.s32.totalorder %s12, 0
      %p46 = por %p44, %p45
      %p47 = scmp.ne.s32.totalorder %s36, %s39
      %p48 = scmp.eq.s32.totalorder %s17, 3
      %p49 = por %p47, %p48
      %p50 = scmp.ne.s32.totalorder %s39, %s40
      %p51 = scmp.eq.s32.totalorder %s17, 0
      %p52 = por %p50, %p51
      %p53 = scmp.ne.s32.totalorder %s39, %s40
      %p54 = scmp.eq.s32.totalorder %s18, 3
      %p55 = por %p53, %p54
      %p57 = scmp.ne.s32.totalorder %s40, %s56
      %p58 = scmp.eq.s32.totalorder %s18, 0
      %p59 = por %p57, %p58
      %s60 = ssub.s32 %s19, %s31
      %s61 = ssub.s32 %s20, %s27
      %s62 = sor.u32 %s60, %s61
      %p63 = scmp.eq.s32.totalorder %s62, 0
      %s65 = sadd.s32 %s64, 1
      %s66 = scalar_select %p63, %s64, %s65
      %p69 = pneg %p63
      %p70 = scmp.eq.s32.totalorder %s12, 3
      %p71 = por %p69, %p70
      %p72 = scmp.ne.s32.totalorder %s64, %s67
      %p73 = scmp.eq.s32.totalorder %s12, 0
      %p74 = por %p72, %p73
      %p75 = scmp.ne.s32.totalorder %s64, %s67
      %p76 = scmp.eq.s32.totalorder %s17, 3
      %p77 = por %p75, %p76
      %p78 = scmp.ne.s32.totalorder %s67, %s68
      %p79 = scmp.eq.s32.totalorder %s17, 0
      %p80 = por %p78, %p79
      %p81 = scmp.ne.s32.totalorder %s67, %s68
      %p82 = scmp.eq.s32.totalorder %s18, 3
      %p83 = por %p81, %p82
      %p85 = scmp.ne.s32.totalorder %s68, %s84
      %p86 = scmp.eq.s32.totalorder %s18, 0
      %p87 = por %p85, %p86
      %s89 = sadd.s32 %s88, 1
      %p92 = scmp.eq.s32.totalorder %s12, 3
      %p93 = scmp.ne.s32.totalorder %s88, %s90
      %p94 = scmp.eq.s32.totalorder %s12, 0
      %p95 = por %p93, %p94
      %p96 = scmp.ne.s32.totalorder %s88, %s90
      %p97 = scmp.eq.s32.totalorder %s17, 3
      %p98 = por %p96, %p97
      %p99 = scmp.ne.s32.totalorder %s90, %s91
      %p100 = scmp.eq.s32.totalorder %s17, 0
      %p101 = por %p99, %p100
      %p102 = scmp.ne.s32.totalorder %s90, %s91
      %p103 = scmp.eq.s32.totalorder %s18, 3
      %p104 = por %p102, %p103
      %p106 = scmp.ne.s32.totalorder %s91, %s105
      %p107 = scmp.eq.s32.totalorder %s18, 0
      %p108 = por %p106, %p107
      %s109 = ssub.s32 %s19, %s31
      %s110 = ssub.s32 %s20, %s27
      %s111 = sor.u32 %s109, %s110
      %p112 = scmp.eq.s32.totalorder %s111, 0
      %s114 = sadd.s32 %s113, 1
      %s115 = scalar_select %p112, %s113, %s114
      %p118 = pneg %p112
      %p119 = scmp.eq.s32.totalorder %s12, 3
      %p120 = por %p118, %p119
      %p121 = scmp.ne.s32.totalorder %s113, %s116
      %p122 = scmp.eq.s32.totalorder %s12, 0
      %p123 = por %p121, %p122
      %p124 = scmp.ne.s32.totalorder %s113, %s116
      %p125 = scmp.eq.s32.totalorder %s17, 3
      %p126 = por %p124, %p125
      %p127 = scmp.ne.s32.totalorder %s116, %s117
      %p128 = scmp.eq.s32.totalorder %s17, 0
      %p129 = por %p127, %p128
      %p130 = scmp.ne.s32.totalorder %s116, %s117
      %p131 = scmp.eq.s32.totalorder %s18, 3
      %p132 = por %p130, %p131
      %p134 = scmp.ne.s32.totalorder %s117, %s133
      %p135 = scmp.eq.s32.totalorder %s18, 0
      %p136 = por %p134, %p135
      %p137 = scmp.le.s32.totalorder 1, %s12
      %p138 = scmp.lt.s32.totalorder %s12, 5
      %p139 = pnand %p137, %p138
      %p140 = pneg %p139
      // Predicated region
      $region9: #{tpu_custom_call.1} parent=5 // pred_check
        _
      $region10: #{tpu_custom_call.1} parent=5 // pred_check_branch
        %142 = sbr.rel (%p139) target = $region12
      $region11: #{tpu_custom_call.1} parent=5 // pred_region
        %s143 = ssub.s32 %s12, 1
        // Predicated region
        $region13: #{tpu_custom_call.1} parent=11 // pred_check
          %p144 = pneg %p101
        $region14: #{tpu_custom_call.1} parent=11 // pred_check_branch
          %146 = sbr.rel (%p144) target = $region16
        $region15: #{tpu_custom_call.1} parent=11 // pred_region
          _
        $region16: #{tpu_custom_call.1} parent=11 // pred_fallthru
          _
      $region12: #{tpu_custom_call.1} parent=5 // pred_fallthru
        _
      %p147 = scmp.lt.s32.totalorder %s12, 4
      // Predicated region
      $region17: #{tpu_custom_call.1} parent=5 // pred_check
        %p148 = pneg %p147
      $region18: #{tpu_custom_call.1} parent=5 // pred_check_branch
        %150 = sbr.rel (%p148) target = $region20
      $region19: #{tpu_custom_call.1} parent=5 // pred_region
        // Predicated region
        $region21: #{tpu_custom_call.1} parent=19 // pred_check
          %p151 = pneg %p46
        $region22: #{tpu_custom_call.1} parent=19 // pred_check_branch
          %153 = sbr.rel (%p151) target = $region24
        $region23: #{tpu_custom_call.1} parent=19 // pred_region
          %s154 = sand.u32 %s36, 1
          %s155 = sand.u32 %s36, 1
          %s156 = smul.addr %s155, 40
          %s157 = scalar_lea.vmem [#allocation2], %s156
          %s158 = smul.addr %s19, 10
          %s159 = sadd.s32 %s20, %s158
          %s160 = smul.addr %s159, 8
          %s161 = scalar_lea.vmem %s0, %s160
          // Predicated region
          $region25: #{tpu_custom_call.1} parent=23 // pred_check
            _
          $region26: #{tpu_custom_call.1} parent=23 // pred_check_branch
            %163 = sbr.rel (0) target = $region28
          $region27: #{tpu_custom_call.1} parent=23 // pred_region
            // Predicated region
            $region29: #{tpu_custom_call.1} parent=27 // pred_check
              _
            $region30: #{tpu_custom_call.1} parent=27 // pred_check_branch
              %165 = sbr.rel (0) target = $region32
            $region31: #{tpu_custom_call.1} parent=27 // pred_region
              // Predicated region
              $region44: #{tpu_custom_call.1} parent=31 // pred_check
                _
              $region45: #{tpu_custom_call.1} parent=31 // pred_check_branch
                %188 = sbr.rel (0) target = $region47
              $region46: #{tpu_custom_call.1} parent=31 // pred_region
                loop: start=0, step=1, limit=1
                $region48: #{tpu_custom_call.1} parent=46 // loop_pre_header
                  _
                $region49: #{tpu_custom_call.1} parent=46 // loop_header
                  %s190 = sphi 0, %s194
                  %p191 = scmp.ge.s32.totalorder %s190, 1
                  %s195 = sphi %s161, %s161
                  %s196 = sphi %s157, %s157
                $region50: #{tpu_custom_call.1} parent=46 // loop_header_branch
                  %193 = sbr.rel (%p191) target = $region54
                $region51: #{tpu_custom_call.1} parent=46 // loop_body
                  %v197 = vld [vmem:[%s195] sm:$0xff]
                  %198 = vst [vmem:[%s196] sm:$0xff] %v197
                  %v199 = vld [vmem:[%s195 + $0x10] sm:$0xff]
                  %200 = vst [vmem:[%s196 + $0x8] sm:$0xff] %v199
                  %v201 = vld [vmem:[%s195 + $0x20] sm:$0xff]
                  %202 = vst [vmem:[%s196 + $0x10] sm:$0xff] %v201
                  %v203 = vld [vmem:[%s195 + $0x30] sm:$0xff]
                  %204 = vst [vmem:[%s196 + $0x18] sm:$0xff] %v203
                  %v205 = vld [vmem:[%s195 + $0x40] sm:$0xff]
                  %206 = vst [vmem:[%s196 + $0x20] sm:$0xff] %v205
                $region52: #{tpu_custom_call.1} parent=46 // loop_footer
                  %s194 = sadd.s32 1, %s190
                $region53: #{tpu_custom_call.1} parent=46 // loop_footer_branch
                  %189 = sbr.rel target = $region49
                $region54: #{tpu_custom_call.1} parent=46 // loop_exit
                  _
              $region47: #{tpu_custom_call.1} parent=31 // pred_fallthru
                _
              // Predicated region
              $region55: #{tpu_custom_call.1} parent=31 // pred_check
                _
              $region56: #{tpu_custom_call.1} parent=31 // pred_check_branch
                %208 = sbr.rel target = $region58
              $region57: #{tpu_custom_call.1} parent=31 // pred_region
                _
              $region58: #{tpu_custom_call.1} parent=31 // pred_fallthru
                _
            $region32: #{tpu_custom_call.1} parent=27 // pred_fallthru
              _
            // Predicated region
            $region33: #{tpu_custom_call.1} parent=27 // pred_check
              _
            $region34: #{tpu_custom_call.1} parent=27 // pred_check_branch
              %167 = sbr.rel target = $region36
            $region35: #{tpu_custom_call.1} parent=27 // pred_region
              loop: start=0, step=1, limit=1
              $region37: #{tpu_custom_call.1} parent=35 // loop_pre_header
                _
              $region38: #{tpu_custom_call.1} parent=35 // loop_header
                %s170 = sphi 0, %s174
                %p171 = scmp.ge.s32.totalorder %s170, 1
                %s175 = sphi %s161, %s161
                %s176 = sphi %s157, %s157
              $region39: #{tpu_custom_call.1} parent=35 // loop_header_branch
                %173 = sbr.rel (%p171) target = $region43
              $region40: #{tpu_custom_call.1} parent=35 // loop_body
                %v177 = vld [vmem:[%s175] sm:$0xff]
                %178 = vst [vmem:[%s176] sm:$0xff] %v177
                %v179 = vld [vmem:[%s175 + $0x10] sm:$0xff]
                %180 = vst [vmem:[%s176 + $0x8] sm:$0xff] %v179
                %v181 = vld [vmem:[%s175 + $0x20] sm:$0xff]
                %182 = vst [vmem:[%s176 + $0x10] sm:$0xff] %v181
                %v183 = vld [vmem:[%s175 + $0x30] sm:$0xff]
                %184 = vst [vmem:[%s176 + $0x18] sm:$0xff] %v183
                %v185 = vld [vmem:[%s175 + $0x40] sm:$0xff]
                %186 = vst [vmem:[%s176 + $0x20] sm:$0xff] %v185
              $region41: #{tpu_custom_call.1} parent=35 // loop_footer
                %s174 = sadd.s32 1, %s170
              $region42: #{tpu_custom_call.1} parent=35 // loop_footer_branch
                %169 = sbr.rel target = $region38
              $region43: #{tpu_custom_call.1} parent=35 // loop_exit
                _
            $region36: #{tpu_custom_call.1} parent=27 // pred_fallthru
              _
          $region28: #{tpu_custom_call.1} parent=23 // pred_fallthru
            _
          %209 = vnop
        $region24: #{tpu_custom_call.1} parent=19 // pred_fallthru
          _
        // Predicated region
        $region59: #{tpu_custom_call.1} parent=19 // pred_check
          %p210 = pneg %p74
        $region60: #{tpu_custom_call.1} parent=19 // pred_check_branch
          %212 = sbr.rel (%p210) target = $region62
        $region61: #{tpu_custom_call.1} parent=19 // pred_region
          %p213 = scmp.lt.s32.totalorder %s19, 1
          %s214 = scalar_select %p213, %s19, 1
          %p215 = scmp.lt.s32.totalorder %s20, 1
          %s216 = scalar_select %p215, %s20, 1
          %s217 = smul.addr %s214, 2
          %s218 = sadd.s32 %s216, %s217
          %s219 = scalar_lea.vmem %s1, %s218
        $region62: #{tpu_custom_call.1} parent=19 // pred_fallthru
          _
      $region20: #{tpu_custom_call.1} parent=5 // pred_fallthru
        _
      %p220 = scmp.le.s32.totalorder 1, %s12
      %p221 = scmp.lt.s32.totalorder %s12, 5
      %p222 = pnand %p220, %p221
      %p223 = pneg %p222
      // Predicated region
      $region63: #{tpu_custom_call.1} parent=5 // pred_check
        _
      $region64: #{tpu_custom_call.1} parent=5 // pred_check_branch
        %225 = sbr.rel (%p222) target = $region66
      $region65: #{tpu_custom_call.1} parent=5 // pred_region
        %s226 = ssub.s32 %s12, 1
        %s227 = sand.u32 %s39, 1
        %s228 = sand.u32 %s39, 1
        %s229 = smul.addr %s228, 40
        %s230 = scalar_lea.vmem [#allocation2], %s229
        // Predicated region
        $region67: #{tpu_custom_call.1} parent=65 // pred_check
          %p231 = pneg %p52
        $region68: #{tpu_custom_call.1} parent=65 // pred_check_branch
          %233 = sbr.rel (%p231) target = $region70
        $region69: #{tpu_custom_call.1} parent=65 // pred_region
          _
        $region70: #{tpu_custom_call.1} parent=65 // pred_fallthru
          _
        %s234 = sand.u32 %s39, 1
        %s235 = sand.u32 %s39, 1
        %s236 = smul.addr %s235, 40
        %s237 = scalar_lea.vmem [#allocation2], %s236
        %p238 = pneg %p52
        %p239 = pneg %p49
        %p240 = scmp.lt.s32.totalorder %s21, 1
        %s241 = scalar_select %p240, %s21, 1
        %p242 = scmp.lt.s32.totalorder %s22, 1
        %s243 = scalar_select %p242, %s22, 1
        %s244 = smul.addr %s241, 2
        %s245 = sadd.s32 %s243, %s244
        %s246 = scalar_lea.vmem %s1, %s245
        %p247 = pneg %p80
        %p248 = pneg %p77
        %p249 = pneg %p101
        %p250 = pneg %p98
        %p251 = pneg %p129
        %p252 = pneg %p126
        %s253 = sand.u32 %s116, 1
        %s254 = scalar_lea.sflag [#allocation4], %s253
        %s255 = sand.u32 %s116, 1
        %s256 = scalar_lea.vmem [#allocation3], %s255
        %p257 = scmp.lt.s32.totalorder %s21, 1
        %s258 = scalar_select %p257, %s21, 1
        %p259 = scmp.lt.s32.totalorder %s22, 1
        %s260 = scalar_select %p259, %s22, 1
        %s261 = smul.addr %s258, 2
        %s262 = sadd.s32 %s260, %s261
        %s263 = scalar_lea.vmem %s1, %s262
        %v264 = vld [vmem:[%s230] sm:$0xff]
        %v265 = vld [vmem:[%s230 + $0x8] sm:$0xff]
        %v266 = vld [vmem:[%s230 + $0x10] sm:$0xff]
        %v267 = vld [vmem:[%s230 + $0x18] sm:$0xff]
        %v268 = vld [vmem:[%s230 + $0x20] sm:$0x1f]
        %v269 = vld [vmem:[%s263] sm:$0x1]
        %vm270 = vcmask 1044480
        %v271 = vsel %vm270, %v268, -inf
        %v272 = vmax.f32 %v264, %v271
        %v273 = vmax.f32 %v272, %v265
        %v274 = vmax.f32 %v266, %v267
        %v275 = vmax.f32 %v273, %v274
        %v276 = vrot.slane %v275, 4
        %v277 = vmax.f32 %v275, %v276
        %v278 = vrot.slane %v277, 2
        %v279 = vmax.f32 %v277, %v278
        %v280 = vrot.slane %v279, 1
        %v281 = vmax.f32 %v279, %v280
        %v282 = vsub.f32 %v264, %v281
        %v283 = vsub.f32 %v265, %v281
        %v284 = vsub.f32 %v266, %v281
        %v285 = vsub.f32 %v267, %v281
        %v286 = vsub.f32 %v268, %v281
        %v287 = vmul.f32 %v282, 1.442695
        %v288 = vpow.pop %v287
        %v289 = vmul.f32 %v283, 1.442695
        %v290 = vpow.pop %v289
        %v291 = vmul.f32 %v284, 1.442695
        %v292 = vpow.pop %v291
        %v293 = vmul.f32 %v285, 1.442695
        %v294 = vpow.pop %v293
        %v295 = vmul.f32 %v286, 1.442695
        %v296 = vpow.pop %v295
        %v297 = vadd.f32 %v288, %v290
        %v298 = vadd.f32 %v297, %v292
        %v299 = vadd.f32 %v298, %v294
        %v300 = vsel %vm270, %v296, 0.0
        %v301 = vadd.f32 %v299, %v300
        %v302 = vrot.slane %v301, 4
        %v303 = vadd.f32 %v301, %v302
        %v304 = vrot.slane %v303, 2
        %v305 = vadd.f32 %v303, %v304
        %v306 = vrot.slane %v305, 1
        %v307 = vadd.f32 %v305, %v306
        %v308 = vlog2.pop %v307
        %v309 = vmul.f32 %v308, 0.6931472
        %v310 = vadd.f32 %v281, %v309
        %v311 = vlaneseq
        %v312 = vshrl.u32 %v311, 7
        %v313 = vadd.s32 %v312, 8
        %v314 = vadd.s32 %v312, 16
        %v315 = vadd.s32 %v312, 24
        %v316 = vadd.s32 %v312, 32
        %v317 = vlaneseq
        %v318 = vshrl.u32 %v317, 7
        %v319 = vsub.s32 0, %v318
        %v320 = vrot.slane %v269, %v319
        %vm321 = vcmp.eq.s32.totalorder %v312, %v320
        %vm322 = vcmp.eq.s32.totalorder %v313, %v320
        %vm323 = vcmp.eq.s32.totalorder %v314, %v320
        %vm324 = vcmp.eq.s32.totalorder %v315, %v320
        %vm325 = vcmp.eq.s32.totalorder %v316, %v320
        %v326 = vsel %vm321, %v264, 0.0
        %v327 = vsel %vm322, %v265, 0.0
        %v328 = vsel %vm323, %v266, 0.0
        %v329 = vsel %vm324, %v267, 0.0
        %v330 = vsel %vm325, %v268, 0.0
        %v331 = vadd.f32 %v326, %v327
        %v332 = vadd.f32 %v331, %v328
        %v333 = vadd.f32 %v332, %v329
        %v334 = vsel %vm270, %v330, 0.0
        %v335 = vadd.f32 %v333, %v334
        %v336 = vrot.slane %v335, 4
        %v337 = vadd.f32 %v335, %v336
        %v338 = vrot.slane %v337, 2
        %v339 = vadd.f32 %v337, %v338
        %v340 = vrot.slane %v339, 1
        %v341 = vadd.f32 %v339, %v340
        %v342 = vsel %vm321, %v288, 0.0
        %v343 = vsel %vm322, %v290, 0.0
        %v344 = vsel %vm323, %v292, 0.0
        %v345 = vsel %vm324, %v294, 0.0
        %v346 = vsel %vm325, %v296, 0.0
        %v347 = vadd.f32 %v342, %v343
        %v348 = vadd.f32 %v347, %v344
        %v349 = vadd.f32 %v348, %v345
        %v350 = vsel %vm270, %v346, 0.0
        %v351 = vadd.f32 %v349, %v350
        %v352 = vrot.slane %v351, 4
        %v353 = vadd.f32 %v351, %v352
        %v354 = vrot.slane %v353, 2
        %v355 = vadd.f32 %v353, %v354
        %v356 = vrot.slane %v355, 1
        %v357 = vadd.f32 %v355, %v356
        %v358 = vld [vmem:[%s2] sm:$0xff]
        %v359 = vld [vmem:[%s2 + $0x8] sm:$0xff]
        %v360 = vld [vmem:[%s2 + $0x10] sm:$0xff]
        %v361 = vld [vmem:[%s2 + $0x18] sm:$0xff]
        %v362 = vld [vmem:[%s2 + $0x20] sm:$0x1f]
        %v363 = vsel %vm321, %v358, 0.0
        %v364 = vsel %vm322, %v359, 0.0
        %v365 = vsel %vm323, %v360, 0.0
        %v366 = vsel %vm324, %v361, 0.0
        %v367 = vsel %vm325, %v362, 0.0
        %v368 = vadd.f32 %v363, %v364
        %v369 = vadd.f32 %v368, %v365
        %v370 = vadd.f32 %v369, %v366
        %v371 = vsel %vm270, %v367, 0.0
        %v372 = vadd.f32 %v370, %v371
        %v373 = vrot.slane %v372, 4
        %v374 = vadd.f32 %v372, %v373
        %v375 = vrot.slane %v374, 2
        %v376 = vadd.f32 %v374, %v375
        %v377 = vrot.slane %v376, 1
        %v378 = vadd.f32 %v376, %v377
        %v379 = vsub.f32 %v341, %v310
        %v380 = vsub.f32 %v307, %v357
        %v381 = vrcp.pop %v307
        %v382 = vmul.f32 %v380, %v381
        %v383 = vsub.f32 0.0, %v378
        %v384 = vmul.f32 %v383, %v382
        %v385 = vmul.f32 %v384, %v382
        %v386 = vmul.f32 %v385, %v379
        %387 = vst [vmem:[%s256] sm:$0x1] %v386
        %s388 = sand.u32 %s116, 1
        %s389 = scalar_lea.sflag [#allocation4], %s388
        %s390 = sand.u32 %s116, 1
        %s391 = scalar_lea.vmem [#allocation3], %s390
        // Predicated region
        $region71: #{tpu_custom_call.1} parent=65 // pred_check
          %p392 = pneg %p126
        $region72: #{tpu_custom_call.1} parent=65 // pred_check_branch
          %394 = sbr.rel (%p392) target = $region74
        $region73: #{tpu_custom_call.1} parent=65 // pred_region
          %s396 = ssub.s32 16, 16
          %397 = vsyncadd %s389, %s396
          %s398 = smul.addr %s21, 2
          %s399 = sadd.s32 %s22, %s398
          %s400 = smul.addr %s399, 16
          %s401 = scalar_lea.hbm %s3, %s400
          %s403 = sshll.u32 %s391, 4
          %s404 = int_to_ptr.vmem [resolvable:$true] %s403
          %406 = dma.vmem_to_hbm [thread:$0]  %s404, 16, %s401, %s389
        $region74: #{tpu_custom_call.1} parent=65 // pred_fallthru
          _
      $region66: #{tpu_custom_call.1} parent=5 // pred_fallthru
        _
      %p407 = scmp.le.s32.totalorder 2, %s12
      // Predicated region
      $region75: #{tpu_custom_call.1} parent=5 // pred_check
        %p408 = pneg %p407
      $region76: #{tpu_custom_call.1} parent=5 // pred_check_branch
        %410 = sbr.rel (%p408) target = $region78
      $region77: #{tpu_custom_call.1} parent=5 // pred_region
        %s411 = ssub.s32 %s12, 2
        // Predicated region
        $region79: #{tpu_custom_call.1} parent=77 // pred_check
          %p412 = pneg %p132
        $region80: #{tpu_custom_call.1} parent=77 // pred_check_branch
          %414 = sbr.rel (%p412) target = $region82
        $region81: #{tpu_custom_call.1} parent=77 // pred_region
          %s415 = sand.u32 %s117, 1
          %s416 = scalar_lea.sflag [#allocation4], %s415
          %s417 = sand.u32 %s117, 1
          %s418 = scalar_lea.vmem [#allocation3], %s417
          %419 = dma.done %s416, 16
        $region82: #{tpu_custom_call.1} parent=77 // pred_fallthru
          _
      $region78: #{tpu_custom_call.1} parent=5 // pred_fallthru
        _
    $region6: #{tpu_custom_call.1} parent=1 // loop_footer
      %s16 = sadd.s32 1, %s12
    $region7: #{tpu_custom_call.1} parent=1 // loop_footer_branch
      %11 = sbr.rel target = $region3
    $region8: #{tpu_custom_call.1} parent=1 // loop_exit
      _
    %420 = vsyncpa [#allocation4], 1
    %s421 = scalar_lea.sflag [#allocation4], 1
    %422 = vsyncpa %s421, 1

</llo_original>
